<compile_context>
chip_gen: v5e
topology: v5e:2x2
jax: 0.10.0
libtpu: 0.0.40
codegen_flags: <defaults>
</compile_context>

<pallas_src>
import functools

import jax
import jax.numpy as jnp
from jax.experimental import pallas as pl
from jax.experimental.pallas import tpu as pltpu

STATE_SIZE = 4
ACTION_SIZE = 7
LAYER_DIMS = [STATE_SIZE, 64, 64, 96, 96, 64, 64, ACTION_SIZE]

PAD_F = 128          # lane-aligned hidden width
OUT_PAD = 8          # padded output feature width (7 -> 8)
DEFAULT_BLOCK_BATCH = 2048
ROW_ALIGN = 16       # bf16 sublane pack is (16, 128)


def _cdiv(a, b):
    return (a + b - 1) // b


def _round_up(n, m):
    return ((n + m - 1) // m) * m


def _device_kind_lower():
    try:
        return jax.devices()[0].device_kind.lower()
    except Exception:  # pragma: no cover - no accelerator at import time
        return ""


_KIND = _device_kind_lower()
# v7x (and v4 megacore) expose two TensorCores; the ("parallel",) batch axis
# is sharded across them, so keep the grid length even.
_TWO_TENSORCORES = ("v7" in _KIND) or ("tpu7" in _KIND) or ("v4" in _KIND)
# bf16 VALU exists on v6e/v7x; keep an f32 epilogue on v5e / unknown chips.
_BF16_EPILOGUE = ("v6" in _KIND) or ("v7" in _KIND) or ("tpu7" in _KIND)


def _choose_tiling(batch, block_batch):
    """Batch-adaptive tile size (multiple of 16) and padded batch."""
    batch = max(int(batch), 1)
    n_blocks = max(1, _cdiv(batch, max(int(block_batch), ROW_ALIGN)))
    if _TWO_TENSORCORES and batch > ROW_ALIGN and (n_blocks % 2):
        n_blocks += 1  # even block count -> both TensorCores busy
    tb = _round_up(_cdiv(batch, n_blocks), ROW_ALIGN)
    pad_b = _round_up(batch, tb)
    return tb, pad_b, pad_b // tb


def _qnet_kernel(h_ref, wmid_ref, w7_ref, b_ref, o_ref, *, bf16_epilogue):
    """One batch tile: fc2..fc7 fused in VMEM (fc1 is hoisted to the wrapper).

    h_ref:    (TB, PAD_F)        bf16  ReLU(fc1(x)), padded lanes are zero
    wmid_ref: (5, PAD_F, PAD_F)  bf16  fc2..fc6 weights (zero padded)
    w7_ref:   (PAD_F, OUT_PAD)   bf16  fc7 weights (zero padded)
    b_ref:    (8, PAD_F)         f32   row i = bias of layer i+1 (zero padded)
    o_ref:    (TB, OUT_PAD)      f32
    """
    h = h_ref[...]  # bf16

    if bf16_epilogue:
        # v6e/v7x: bias + ReLU in bf16 (half the VALU / vreg / store traffic).
        b_mid = b_ref[...].astype(jnp.bfloat16)
        for i in range(5):
            hm = jnp.dot(h, wmid_ref[i], preferred_element_type=jnp.float32)
            h = jnp.maximum(hm.astype(jnp.bfloat16) + b_mid[i + 1:i + 2, :],
                            0.0)
    else:
        # v5e: no bf16 VALU -> keep the f32 epilogue, cast only for the MXU.
        for i in range(5):
            hm = jnp.dot(h, wmid_ref[i], preferred_element_type=jnp.float32)
            h = jnp.maximum(hm + b_ref[i + 1:i + 2, :],
                            0.0).astype(jnp.bfloat16)

    # fc7: no activation, f32 output.
    y = jnp.dot(h, w7_ref[...], preferred_element_type=jnp.float32)
    o_ref[...] = y + b_ref[6:7, 0:OUT_PAD]


def init_qnet_params(key, dtype=jnp.float32):
    """PyTorch-style uniform(-1/sqrt(fan_in), 1/sqrt(fan_in)) init.

    Weights are (in_features, out_features) so forward is y = x @ W + b.
    """
    params = []
    for i in range(7):
        fan_in, fan_out = LAYER_DIMS[i], LAYER_DIMS[i + 1]
        key, kw, kb = jax.random.split(key, 3)
        bound = 1.0 / jnp.sqrt(jnp.asarray(fan_in, dtype))
        w = jax.random.uniform(kw, (fan_in, fan_out), dtype, -bound, bound)
        b = jax.random.uniform(kb, (fan_out,), dtype, -bound, bound)
        params.append((w, b))
    return params


def pack_params(params):
    """Pack 7 (w, b) pairs into 4 padded arrays: bf16 weights, f32 biases."""
    # fc1 weight stays un-padded in K (used by the XLA wrapper, not the kernel).
    w1 = jnp.zeros((STATE_SIZE, PAD_F), jnp.bfloat16)
    w1 = w1.at[:, :LAYER_DIMS[1]].set(params[0][0].astype(jnp.bfloat16))

    wmid = jnp.zeros((5, PAD_F, PAD_F), jnp.bfloat16)
    for i in range(1, 6):
        fin, fout = params[i][0].shape
        wmid = wmid.at[i - 1, :fin, :fout].set(
            params[i][0].astype(jnp.bfloat16))

    w7 = jnp.zeros((PAD_F, OUT_PAD), jnp.bfloat16)
    w7 = w7.at[:LAYER_DIMS[6], :ACTION_SIZE].set(
        params[6][0].astype(jnp.bfloat16))

    bias = jnp.zeros((8, PAD_F), jnp.float32)
    for i in range(7):
        bias = bias.at[i, :params[i][1].shape[0]].set(
            params[i][1].astype(jnp.float32))

    return w1, wmid, w7, bias


@functools.partial(jax.jit, static_argnames=("block_batch",))
def qnet_forward(x, w1, wmid, w7, bias, *, block_batch=DEFAULT_BLOCK_BATCH):
    """x: (batch, STATE_SIZE) -> (batch, ACTION_SIZE), float32."""
    batch = x.shape[0]
    tb, pad_b, n_blocks = _choose_tiling(batch, block_batch)

    # fc1 hoisted to XLA: 4->64 would waste a full 128-wide MXU pass in-kernel.
    h1 = jnp.dot(x.astype(jnp.bfloat16), w1,
                 preferred_element_type=jnp.float32)
    h1 = jnp.maximum(h1 + bias[0:1, :], 0.0).astype(jnp.bfloat16)
    if pad_b != batch:
        h1 = jnp.pad(h1, ((0, pad_b - batch), (0, 0)))

    kernel = functools.partial(_qnet_kernel, bf16_epilogue=_BF16_EPILOGUE)

    out = pl.pallas_call(
        kernel,
        out_shape=jax.ShapeDtypeStruct((pad_b, OUT_PAD), jnp.float32),
        grid=(n_blocks,),
        in_specs=[
            pl.BlockSpec((tb, PAD_F), lambda i: (i, 0)),            # h1 tile
            pl.BlockSpec((5, PAD_F, PAD_F), lambda i: (0, 0, 0)),   # fc2..fc6 W
            pl.BlockSpec((PAD_F, OUT_PAD), lambda i: (0, 0)),       # fc7 W
            pl.BlockSpec((8, PAD_F), lambda i: (0, 0)),             # biases
        ],
        out_specs=pl.BlockSpec((tb, OUT_PAD), lambda i: (i, 0)),
        compiler_params=pltpu.CompilerParams(
            dimension_semantics=("parallel",)),
    )(h1, wmid, w7, bias)

    return out[:batch, :ACTION_SIZE]


def qnet_ref(x, params):
    """Pure-JAX f32 reference of the PyTorch forward."""
    h = x.astype(jnp.float32)
    for i, (w, b) in enumerate(params):
        h = h @ w + b
        if i < 6:
            h = jnp.maximum(h, 0.0)
    return h


if __name__ == "__main__":
    key = jax.random.PRNGKey(0)
    kx, kx2, kp = jax.random.split(key, 3)

    params = init_qnet_params(kp)
    w1, wmid, w7, bias = pack_params(params)

    # Small-shape check (batch=2, single grid block).
    x = jax.random.normal(kx, (2, STATE_SIZE), jnp.float32)
    y = jax.block_until_ready(qnet_forward(x, w1, wmid, w7, bias))
    y_ref = qnet_ref(x, params)
    assert y.shape == (2, ACTION_SIZE), y.shape
    # bf16 matmul operands -> loosened tolerance vs. the f32 reference.
    assert jnp.allclose(y, y_ref, atol=5e-2, rtol=5e-2), (
        f"max abs err {jnp.max(jnp.abs(y - y_ref))}")

    # Multi-block check: exercises batch tiling + padded final tile.
    x2 = jax.random.normal(kx2, (200, STATE_SIZE), jnp.float32)
    y2 = jax.block_until_ready(
        qnet_forward(x2, w1, wmid, w7, bias, block_batch=64))
    y2_ref = qnet_ref(x2, params)
    assert y2.shape == (200, ACTION_SIZE), y2.shape
    assert jnp.allclose(y2, y2_ref, atol=5e-2, rtol=5e-2), (
        f"max abs err {jnp.max(jnp.abs(y2 - y2_ref))}")

    print("KERNEL_OK")
</pallas_src>

<mosaic_0001>
module attributes {stable_mosaic.version = 11 : i64} {
  func.func @_qnet_kernel(%arg0: i32, %arg1: memref<16x128xbf16, #tpu.memory_space<vmem>>, %arg2: memref<5x128x128xbf16, #tpu.memory_space<vmem>>, %arg3: memref<128x8xbf16, #tpu.memory_space<vmem>>, %arg4: memref<8x128xf32, #tpu.memory_space<vmem>>, %arg5: memref<16x8xf32, #tpu.memory_space<vmem>>) attributes {dimension_semantics = [#tpu.dimension_semantics<parallel>], iteration_bounds = array<i64: 1>, scalar_prefetch = 0 : i64, scratch_operands = 0 : i64, tpu.core_type = #tpu.core_type<tc>, window_params = [{transform_indices = @transform_0, window_bounds = array<i64: 16, 128>}, {pipeline_mode = #tpu.pipeline_mode<synchronous>, transform_indices = @transform_1, window_bounds = array<i64: 5, 128, 128>}, {pipeline_mode = #tpu.pipeline_mode<synchronous>, transform_indices = @transform_2, window_bounds = array<i64: 128, 8>}, {pipeline_mode = #tpu.pipeline_mode<synchronous>, transform_indices = @transform_3, window_bounds = array<i64: 8, 128>}, {transform_indices = @transform_4, window_bounds = array<i64: 16, 8>}]} {
    %c0 = arith.constant 0 : index
    %c0_0 = arith.constant 0 : index
    %0 = vector.load %arg1[%c0, %c0_0] : memref<16x128xbf16, #tpu.memory_space<vmem>>, vector<16x128xbf16>
    %c0_1 = arith.constant 0 : index
    %c0_2 = arith.constant 0 : index
    %c0_3 = arith.constant 0 : index
    %1 = vector.load %arg2[%c0_1, %c0_2, %c0_3] : memref<5x128x128xbf16, #tpu.memory_space<vmem>>, vector<1x128x128xbf16>
    %2 = vector.shape_cast %1 : vector<1x128x128xbf16> to vector<128x128xbf16>
    %cst = arith.constant dense<0.000000e+00> : vector<16x128xf32>
    %3 = tpu.matmul %0, %2, %cst {dimension_numbers = #tpu.dot_dimension_numbers<[1], [0], [0], [1], [0, 0, 1, 1], [], []>} : vector<16x128xbf16>, vector<128x128xbf16>, vector<16x128xf32> -> vector<16x128xf32>
    %c1 = arith.constant 1 : index
    %c0_4 = arith.constant 0 : index
    %4 = vector.load %arg4[%c1, %c0_4] : memref<8x128xf32, #tpu.memory_space<vmem>>, vector<1x128xf32>
    %5 = vector.broadcast %4 : vector<1x128xf32> to vector<16x128xf32>
    %6 = arith.addf %3, %5 : vector<16x128xf32>
    %cst_5 = arith.constant 0.000000e+00 : f32
    %7 = vector.broadcast %cst_5 : f32 to vector<16x128xf32>
    %8 = arith.maximumf %6, %7 : vector<16x128xf32>
    %9 = arith.truncf %8 : vector<16x128xf32> to vector<16x128xbf16>
    %c1_6 = arith.constant 1 : index
    %c0_7 = arith.constant 0 : index
    %c0_8 = arith.constant 0 : index
    %10 = vector.load %arg2[%c1_6, %c0_7, %c0_8] : memref<5x128x128xbf16, #tpu.memory_space<vmem>>, vector<1x128x128xbf16>
    %11 = vector.shape_cast %10 : vector<1x128x128xbf16> to vector<128x128xbf16>
    %cst_9 = arith.constant dense<0.000000e+00> : vector<16x128xf32>
    %12 = tpu.matmul %9, %11, %cst_9 {dimension_numbers = #tpu.dot_dimension_numbers<[1], [0], [0], [1], [0, 0, 1, 1], [], []>} : vector<16x128xbf16>, vector<128x128xbf16>, vector<16x128xf32> -> vector<16x128xf32>
    %c2 = arith.constant 2 : index
    %c0_10 = arith.constant 0 : index
    %13 = vector.load %arg4[%c2, %c0_10] : memref<8x128xf32, #tpu.memory_space<vmem>>, vector<1x128xf32>
    %14 = vector.broadcast %13 : vector<1x128xf32> to vector<16x128xf32>
    %15 = arith.addf %12, %14 : vector<16x128xf32>
    %cst_11 = arith.constant 0.000000e+00 : f32
    %16 = vector.broadcast %cst_11 : f32 to vector<16x128xf32>
    %17 = arith.maximumf %15, %16 : vector<16x128xf32>
    %18 = arith.truncf %17 : vector<16x128xf32> to vector<16x128xbf16>
    %c2_12 = arith.constant 2 : index
    %c0_13 = arith.constant 0 : index
    %c0_14 = arith.constant 0 : index
    %19 = vector.load %arg2[%c2_12, %c0_13, %c0_14] : memref<5x128x128xbf16, #tpu.memory_space<vmem>>, vector<1x128x128xbf16>
    %20 = vector.shape_cast %19 : vector<1x128x128xbf16> to vector<128x128xbf16>
    %cst_15 = arith.constant dense<0.000000e+00> : vector<16x128xf32>
    %21 = tpu.matmul %18, %20, %cst_15 {dimension_numbers = #tpu.dot_dimension_numbers<[1], [0], [0], [1], [0, 0, 1, 1], [], []>} : vector<16x128xbf16>, vector<128x128xbf16>, vector<16x128xf32> -> vector<16x128xf32>
    %c3 = arith.constant 3 : index
    %c0_16 = arith.constant 0 : index
    %22 = vector.load %arg4[%c3, %c0_16] : memref<8x128xf32, #tpu.memory_space<vmem>>, vector<1x128xf32>
    %23 = vector.broadcast %22 : vector<1x128xf32> to vector<16x128xf32>
    %24 = arith.addf %21, %23 : vector<16x128xf32>
    %cst_17 = arith.constant 0.000000e+00 : f32
    %25 = vector.broadcast %cst_17 : f32 to vector<16x128xf32>
    %26 = arith.maximumf %24, %25 : vector<16x128xf32>
    %27 = arith.truncf %26 : vector<16x128xf32> to vector<16x128xbf16>
    %c3_18 = arith.constant 3 : index
    %c0_19 = arith.constant 0 : index
    %c0_20 = arith.constant 0 : index
    %28 = vector.load %arg2[%c3_18, %c0_19, %c0_20] : memref<5x128x128xbf16, #tpu.memory_space<vmem>>, vector<1x128x128xbf16>
    %29 = vector.shape_cast %28 : vector<1x128x128xbf16> to vector<128x128xbf16>
    %cst_21 = arith.constant dense<0.000000e+00> : vector<16x128xf32>
    %30 = tpu.matmul %27, %29, %cst_21 {dimension_numbers = #tpu.dot_dimension_numbers<[1], [0], [0], [1], [0, 0, 1, 1], [], []>} : vector<16x128xbf16>, vector<128x128xbf16>, vector<16x128xf32> -> vector<16x128xf32>
    %c4 = arith.constant 4 : index
    %c0_22 = arith.constant 0 : index
    %31 = vector.load %arg4[%c4, %c0_22] : memref<8x128xf32, #tpu.memory_space<vmem>>, vector<1x128xf32>
    %32 = vector.broadcast %31 : vector<1x128xf32> to vector<16x128xf32>
    %33 = arith.addf %30, %32 : vector<16x128xf32>
    %cst_23 = arith.constant 0.000000e+00 : f32
    %34 = vector.broadcast %cst_23 : f32 to vector<16x128xf32>
    %35 = arith.maximumf %33, %34 : vector<16x128xf32>
    %36 = arith.truncf %35 : vector<16x128xf32> to vector<16x128xbf16>
    %c4_24 = arith.constant 4 : index
    %c0_25 = arith.constant 0 : index
    %c0_26 = arith.constant 0 : index
    %37 = vector.load %arg2[%c4_24, %c0_25, %c0_26] : memref<5x128x128xbf16, #tpu.memory_space<vmem>>, vector<1x128x128xbf16>
    %38 = vector.shape_cast %37 : vector<1x128x128xbf16> to vector<128x128xbf16>
    %cst_27 = arith.constant dense<0.000000e+00> : vector<16x128xf32>
    %39 = tpu.matmul %36, %38, %cst_27 {dimension_numbers = #tpu.dot_dimension_numbers<[1], [0], [0], [1], [0, 0, 1, 1], [], []>} : vector<16x128xbf16>, vector<128x128xbf16>, vector<16x128xf32> -> vector<16x128xf32>
    %c5 = arith.constant 5 : index
    %c0_28 = arith.constant 0 : index
    %40 = vector.load %arg4[%c5, %c0_28] : memref<8x128xf32, #tpu.memory_space<vmem>>, vector<1x128xf32>
    %41 = vector.broadcast %40 : vector<1x128xf32> to vector<16x128xf32>
    %42 = arith.addf %39, %41 : vector<16x128xf32>
    %cst_29 = arith.constant 0.000000e+00 : f32
    %43 = vector.broadcast %cst_29 : f32 to vector<16x128xf32>
    %44 = arith.maximumf %42, %43 : vector<16x128xf32>
    %45 = arith.truncf %44 : vector<16x128xf32> to vector<16x128xbf16>
    %c0_30 = arith.constant 0 : index
    %c0_31 = arith.constant 0 : index
    %46 = vector.load %arg3[%c0_30, %c0_31] : memref<128x8xbf16, #tpu.memory_space<vmem>>, vector<128x8xbf16>
    %cst_32 = arith.constant dense<0.000000e+00> : vector<16x8xf32>
    %47 = tpu.matmul %45, %46, %cst_32 {dimension_numbers = #tpu.dot_dimension_numbers<[1], [0], [0], [1], [0, 0, 1, 1], [], []>} : vector<16x128xbf16>, vector<128x8xbf16>, vector<16x8xf32> -> vector<16x8xf32>
    %c6 = arith.constant 6 : index
    %c0_33 = arith.constant 0 : index
    %48 = vector.load %arg4[%c6, %c0_33] : memref<8x128xf32, #tpu.memory_space<vmem>>, vector<1x8xf32>
    %49 = vector.broadcast %48 : vector<1x8xf32> to vector<16x8xf32>
    %50 = arith.addf %47, %49 : vector<16x8xf32>
    %c0_34 = arith.constant 0 : index
    %c0_35 = arith.constant 0 : index
    %51 = vector.load %arg5[%c0_34, %c0_35] : memref<16x8xf32, #tpu.memory_space<vmem>>, vector<16x8xf32>
    tpu.vector_store %arg5[%c0_34, %c0_35], %50 {strides = array<i32>} : memref<16x8xf32, #tpu.memory_space<vmem>>, vector<16x8xf32>,
    return
  }
  func.func @transform_0(%arg0: i32) -> (i32, i32) {
    %c0_i32 = arith.constant 0 : i32
    %c0_i32_0 = arith.constant 0 : i32
    return %arg0, %c0_i32 : i32, i32
  }
  func.func @transform_1(%arg0: i32) -> (i32, i32, i32) {
    %c0_i32 = arith.constant 0 : i32
    %c0_i32_0 = arith.constant 0 : i32
    %c0_i32_1 = arith.constant 0 : i32
    %c0_i32_2 = arith.constant 0 : i32
    return %c0_i32, %c0_i32_0, %c0_i32_1 : i32, i32, i32
  }
  func.func @transform_2(%arg0: i32) -> (i32, i32) {
    %c0_i32 = arith.constant 0 : i32
    %c0_i32_0 = arith.constant 0 : i32
    %c0_i32_1 = arith.constant 0 : i32
    return %c0_i32, %c0_i32_0 : i32, i32
  }
  func.func @transform_3(%arg0: i32) -> (i32, i32) {
    %c0_i32 = arith.constant 0 : i32
    %c0_i32_0 = arith.constant 0 : i32
    %c0_i32_1 = arith.constant 0 : i32
    return %c0_i32, %c0_i32_0 : i32, i32
  }
  func.func @transform_4(%arg0: i32) -> (i32, i32) {
    %c0_i32 = arith.constant 0 : i32
    %c0_i32_0 = arith.constant 0 : i32
    return %arg0, %c0_i32 : i32, i32
  }
}

</mosaic_0001>

<llo_original>
// kernel: qnet_forward.1
$region0: #{qnet_forward.1}
  #allocation0 [shape = 'u32[]', space=smem, size = 0x4, offset = 0x4, fixed_abs, tag = 'smem constant byte address 0x4 - core index']
  #allocation1 [shape = 'u32[72,128]{1,0:T(1,128)}', space=vmem, size = 0x9000, scoped, tag = 'internal scratch']
  %s0 = inlined_call_operand.vmem [shape: bf16[16,128], index: 0, kind: input, shape index: {}]
  %s1 = inlined_call_operand.hbm [shape: bf16[5,128,128], index: 1, kind: input, shape index: {}]
  %s2 = inlined_call_operand.vmem [shape: bf16[128,8], index: 2, kind: input, shape index: {}]
  %s3 = inlined_call_operand.vmem [shape: f32[8,128], index: 3, kind: input, shape index: {}]
  %s4 = inlined_call_operand.vmem [shape: f32[16,8], index: 4, kind: output, shape index: {}]
  %s5 = sld [smem:[#allocation0]]
  $region30: #{qnet_forward.1} parent=0
    _
  %s7 = ssub.s32 1, %s5
  %s8 = scalar_select 0, %s7, %s5
  $region1: #{qnet_forward.1} parent=0
    #allocation2 [shape = 'u8[163840]{0}', space=vmem, size = 0x28000, scoped, tag = 'input window, operand 1, single buffered']
    #allocation3 [shape = 's32[1]{0}', space=sflag, size = 0x4, scoped, tag = 'scoped memory for qnet_forward.1']
    %9 = vsyncpa [#allocation3], 0
    // Predicated region
    $region2: #{qnet_forward.1} parent=1 // pred_check
      _
    $region3: #{qnet_forward.1} parent=1 // pred_check_branch
      %11 = sbr.rel (0) target = $region5
    $region4: #{qnet_forward.1} parent=1 // pred_region
      _
    $region5: #{qnet_forward.1} parent=1 // pred_fallthru
      _
    // Predicated region
    $region6: #{qnet_forward.1} parent=1 // pred_check
      _
    $region7: #{qnet_forward.1} parent=1 // pred_check_branch
      %13 = sbr.rel (0) target = $region9
    $region8: #{qnet_forward.1} parent=1 // pred_region
      %15 = vsyncadd [#allocation3], 0
      %s16 = sshll.u32 %s1, 4
      %s17 = int_to_ptr.hbm [resolvable:$true] %s16
      %s18 = sshll.u32 [#allocation2], 4
      %s19 = int_to_ptr.vmem [resolvable:$true] %s18
      %24 = dma.hbm_to_vmem [thread:$0]  %s17, 5120, %s19, [#allocation3], 64, 64, 4
    $region9: #{qnet_forward.1} parent=1 // pred_fallthru
      _
    // Predicated region
    $region10: #{qnet_forward.1} parent=1 // pred_check
      _
    $region11: #{qnet_forward.1} parent=1 // pred_check_branch
      %26 = sbr.rel (0) target = $region13
    $region12: #{qnet_forward.1} parent=1 // pred_region
      _
    $region13: #{qnet_forward.1} parent=1 // pred_fallthru
      _
    // Predicated region
    $region14: #{qnet_forward.1} parent=1 // pred_check
      _
    $region15: #{qnet_forward.1} parent=1 // pred_check_branch
      %28 = sbr.rel (0) target = $region17
    $region16: #{qnet_forward.1} parent=1 // pred_region
      _
    $region17: #{qnet_forward.1} parent=1 // pred_fallthru
      _
    // Predicated region
    $region18: #{qnet_forward.1} parent=1 // pred_check
      _
    $region19: #{qnet_forward.1} parent=1 // pred_check_branch
      %30 = sbr.rel (0) target = $region21
    $region20: #{qnet_forward.1} parent=1 // pred_region
      %32 = dma.done [#allocation3], 5120
    $region21: #{qnet_forward.1} parent=1 // pred_fallthru
      _
    %v33 = vld [vmem:[%s0] sm:$0xf]
    %v34 = vld [vmem:[%s0 + $0x4] sm:$0xf]
    %v35 = vld [vmem:[#allocation2] sm:$0xf]
    %v36 = vld [vmem:[#allocation2 + $0x4] sm:$0xf]
    %v37 = vld [vmem:[#allocation2 + $0x8] sm:$0xf]
    %v38 = vld [vmem:[#allocation2 + $0xc] sm:$0xf]
    %v39 = vld [vmem:[#allocation2 + $0x10] sm:$0xf]
    %v40 = vld [vmem:[#allocation2 + $0x14] sm:$0xf]
    %v41 = vld [vmem:[#allocation2 + $0x18] sm:$0xf]
    %v42 = vld [vmem:[#allocation2 + $0x1c] sm:$0xf]
    %v43 = vld [vmem:[#allocation2 + $0x20] sm:$0xf]
    %v44 = vld [vmem:[#allocation2 + $0x24] sm:$0xf]
    %v45 = vld [vmem:[#allocation2 + $0x28] sm:$0xf]
    %v46 = vld [vmem:[#allocation2 + $0x2c] sm:$0xf]
    %v47 = vld [vmem:[#allocation2 + $0x30] sm:$0xf]
    %v48 = vld [vmem:[#allocation2 + $0x34] sm:$0xf]
    %v49 = vld [vmem:[#allocation2 + $0x38] sm:$0xf]
    %v50 = vld [vmem:[#allocation2 + $0x3c] sm:$0xf]
    %v51 = vld [vmem:[%s3 + $0x1] sm:$0x1]
    %v52 = vperm.slane %v51, 0
    %v55 = vunpack.c.l.b16 %v33
    %v56 = vunpack.c.l.b16 %v34
    %v57 = vpack.c.b16 %v56, %v55
    %v75 = vunpack.c.l.b16 %v35
    %v76 = vunpack.c.l.b16 %v36
    %v77 = vunpack.c.l.b16 %v37
    %v78 = vunpack.c.l.b16 %v38
    %v79 = vunpack.c.l.b16 %v39
    %v80 = vunpack.c.l.b16 %v40
    %v81 = vunpack.c.l.b16 %v41
    %v82 = vunpack.c.l.b16 %v42
    %v83 = vunpack.c.l.b16 %v43
    %v84 = vunpack.c.l.b16 %v44
    %v85 = vunpack.c.l.b16 %v45
    %v86 = vunpack.c.l.b16 %v46
    %v87 = vunpack.c.l.b16 %v47
    %v88 = vunpack.c.l.b16 %v48
    %v89 = vunpack.c.l.b16 %v49
    %v90 = vunpack.c.l.b16 %v50
    %v91 = vpack.c.b16 %v76, %v75
    %v92 = vpack.c.b16 %v78, %v77
    %v93 = vpack.c.b16 %v80, %v79
    %v94 = vpack.c.b16 %v82, %v81
    %v95 = vpack.c.b16 %v84, %v83
    %v96 = vpack.c.b16 %v86, %v85
    %v97 = vpack.c.b16 %v88, %v87
    %v98 = vpack.c.b16 %v90, %v89
    %107 = vmatpush.bf16.msra.mxu0 %v98
    %108 = vmatpush.bf16.msra.mxu0 %v97
    %109 = vmatpush.bf16.msra.mxu0 %v96
    %110 = vmatpush.bf16.msra.mxu0 %v95
    %111 = vmatpush.bf16.msra.mxu0 %v94
    %112 = vmatpush.bf16.msra.mxu0 %v93
    %113 = vmatpush.bf16.msra.mxu0 %v92
    %114 = vmatpush.bf16.msra.mxu0 %v91
    %115 = vmatmul.bf16.gmra.mxu0 %v57
    %v116 = vpop.f32.mrf.mxu0
    %v117 = vadd.f32 %v52, %v116
    %v118 = vpop.f32.mrf.mxu0
    %v119 = vadd.f32 %v52, %v118
    %120 = vdwg.mxu0
    %v121 = vmax.f32 %v117, 0.0
    %v122 = vmax.f32 %v119, 0.0
    %v123 = vpack.c.bf16 %v122, %v121
    %s124 = scalar_lea.vmem [#allocation2], 64
    %v125 = vld [vmem:[%s124] sm:$0xf]
    %v126 = vld [vmem:[%s124 + $0x4] sm:$0xf]
    %v127 = vld [vmem:[%s124 + $0x8] sm:$0xf]
    %v128 = vld [vmem:[%s124 + $0xc] sm:$0xf]
    %v129 = vld [vmem:[%s124 + $0x10] sm:$0xf]
    %v130 = vld [vmem:[%s124 + $0x14] sm:$0xf]
    %v131 = vld [vmem:[%s124 + $0x18] sm:$0xf]
    %v132 = vld [vmem:[%s124 + $0x1c] sm:$0xf]
    %v133 = vld [vmem:[%s124 + $0x20] sm:$0xf]
    %v134 = vld [vmem:[%s124 + $0x24] sm:$0xf]
    %v135 = vld [vmem:[%s124 + $0x28] sm:$0xf]
    %v136 = vld [vmem:[%s124 + $0x2c] sm:$0xf]
    %v137 = vld [vmem:[%s124 + $0x30] sm:$0xf]
    %v138 = vld [vmem:[%s124 + $0x34] sm:$0xf]
    %v139 = vld [vmem:[%s124 + $0x38] sm:$0xf]
    %v140 = vld [vmem:[%s124 + $0x3c] sm:$0xf]
    %v141 = vld [vmem:[%s3 + $0x2] sm:$0x1]
    %v142 = vperm.slane %v141, 0
    %v159 = vunpack.c.l.b16 %v125
    %v160 = vunpack.c.l.b16 %v126
    %v161 = vunpack.c.l.b16 %v127
    %v162 = vunpack.c.l.b16 %v128
    %v163 = vunpack.c.l.b16 %v129
    %v164 = vunpack.c.l.b16 %v130
    %v165 = vunpack.c.l.b16 %v131
    %v166 = vunpack.c.l.b16 %v132
    %v167 = vunpack.c.l.b16 %v133
    %v168 = vunpack.c.l.b16 %v134
    %v169 = vunpack.c.l.b16 %v135
    %v170 = vunpack.c.l.b16 %v136
    %v171 = vunpack.c.l.b16 %v137
    %v172 = vunpack.c.l.b16 %v138
    %v173 = vunpack.c.l.b16 %v139
    %v174 = vunpack.c.l.b16 %v140
    %v175 = vpack.c.b16 %v160, %v159
    %v176 = vpack.c.b16 %v162, %v161
    %v177 = vpack.c.b16 %v164, %v163
    %v178 = vpack.c.b16 %v166, %v165
    %v179 = vpack.c.b16 %v168, %v167
    %v180 = vpack.c.b16 %v170, %v169
    %v181 = vpack.c.b16 %v172, %v171
    %v182 = vpack.c.b16 %v174, %v173
    %191 = vmatpush.bf16.msra.mxu0 %v182
    %192 = vmatpush.bf16.msra.mxu0 %v181
    %193 = vmatpush.bf16.msra.mxu0 %v180
    %194 = vmatpush.bf16.msra.mxu0 %v179
    %195 = vmatpush.bf16.msra.mxu0 %v178
    %196 = vmatpush.bf16.msra.mxu0 %v177
    %197 = vmatpush.bf16.msra.mxu0 %v176
    %198 = vmatpush.bf16.msra.mxu0 %v175
    %199 = vmatmul.bf16.gmra.mxu0 %v123
    %v200 = vpop.f32.mrf.mxu0
    %v201 = vadd.f32 %v142, %v200
    %v202 = vpop.f32.mrf.mxu0
    %v203 = vadd.f32 %v142, %v202
    %204 = vdwg.mxu0
    %v205 = vmax.f32 %v201, 0.0
    %v206 = vmax.f32 %v203, 0.0
    %v207 = vpack.c.bf16 %v206, %v205
    %s208 = scalar_lea.vmem [#allocation2], 128
    %v209 = vld [vmem:[%s208] sm:$0xf]
    %v210 = vld [vmem:[%s208 + $0x4] sm:$0xf]
    %v211 = vld [vmem:[%s208 + $0x8] sm:$0xf]
    %v212 = vld [vmem:[%s208 + $0xc] sm:$0xf]
    %v213 = vld [vmem:[%s208 + $0x10] sm:$0xf]
    %v214 = vld [vmem:[%s208 + $0x14] sm:$0xf]
    %v215 = vld [vmem:[%s208 + $0x18] sm:$0xf]
    %v216 = vld [vmem:[%s208 + $0x1c] sm:$0xf]
    %v217 = vld [vmem:[%s208 + $0x20] sm:$0xf]
    %v218 = vld [vmem:[%s208 + $0x24] sm:$0xf]
    %v219 = vld [vmem:[%s208 + $0x28] sm:$0xf]
    %v220 = vld [vmem:[%s208 + $0x2c] sm:$0xf]
    %v221 = vld [vmem:[%s208 + $0x30] sm:$0xf]
    %v222 = vld [vmem:[%s208 + $0x34] sm:$0xf]
    %v223 = vld [vmem:[%s208 + $0x38] sm:$0xf]
    %v224 = vld [vmem:[%s208 + $0x3c] sm:$0xf]
    %v225 = vld [vmem:[%s3 + $0x3] sm:$0x1]
    %v226 = vperm.slane %v225, 0
    %v243 = vunpack.c.l.b16 %v209
    %v244 = vunpack.c.l.b16 %v210
    %v245 = vunpack.c.l.b16 %v211
    %v246 = vunpack.c.l.b16 %v212
    %v247 = vunpack.c.l.b16 %v213
    %v248 = vunpack.c.l.b16 %v214
    %v249 = vunpack.c.l.b16 %v215
    %v250 = vunpack.c.l.b16 %v216
    %v251 = vunpack.c.l.b16 %v217
    %v252 = vunpack.c.l.b16 %v218
    %v253 = vunpack.c.l.b16 %v219
    %v254 = vunpack.c.l.b16 %v220
    %v255 = vunpack.c.l.b16 %v221
    %v256 = vunpack.c.l.b16 %v222
    %v257 = vunpack.c.l.b16 %v223
    %v258 = vunpack.c.l.b16 %v224
    %v259 = vpack.c.b16 %v244, %v243
    %v260 = vpack.c.b16 %v246, %v245
    %v261 = vpack.c.b16 %v248, %v247
    %v262 = vpack.c.b16 %v250, %v249
    %v263 = vpack.c.b16 %v252, %v251
    %v264 = vpack.c.b16 %v254, %v253
    %v265 = vpack.c.b16 %v256, %v255
    %v266 = vpack.c.b16 %v258, %v257
    %275 = vmatpush.bf16.msra.mxu0 %v266
    %276 = vmatpush.bf16.msra.mxu0 %v265
    %277 = vmatpush.bf16.msra.mxu0 %v264
    %278 = vmatpush.bf16.msra.mxu0 %v263
    %279 = vmatpush.bf16.msra.mxu0 %v262
    %280 = vmatpush.bf16.msra.mxu0 %v261
    %281 = vmatpush.bf16.msra.mxu0 %v260
    %282 = vmatpush.bf16.msra.mxu0 %v259
    %283 = vmatmul.bf16.gmra.mxu0 %v207
    %v284 = vpop.f32.mrf.mxu0
    %v285 = vadd.f32 %v226, %v284
    %v286 = vpop.f32.mrf.mxu0
    %v287 = vadd.f32 %v226, %v286
    %288 = vdwg.mxu0
    %v289 = vmax.f32 %v285, 0.0
    %v290 = vmax.f32 %v287, 0.0
    %v291 = vpack.c.bf16 %v290, %v289
    %s292 = scalar_lea.vmem [#allocation2], 192
    %v293 = vld [vmem:[%s292] sm:$0xf]
    %v294 = vld [vmem:[%s292 + $0x4] sm:$0xf]
    %v295 = vld [vmem:[%s292 + $0x8] sm:$0xf]
    %v296 = vld [vmem:[%s292 + $0xc] sm:$0xf]
    %v297 = vld [vmem:[%s292 + $0x10] sm:$0xf]
    %v298 = vld [vmem:[%s292 + $0x14] sm:$0xf]
    %v299 = vld [vmem:[%s292 + $0x18] sm:$0xf]
    %v300 = vld [vmem:[%s292 + $0x1c] sm:$0xf]
    %v301 = vld [vmem:[%s292 + $0x20] sm:$0xf]
    %v302 = vld [vmem:[%s292 + $0x24] sm:$0xf]
    %v303 = vld [vmem:[%s292 + $0x28] sm:$0xf]
    %v304 = vld [vmem:[%s292 + $0x2c] sm:$0xf]
    %v305 = vld [vmem:[%s292 + $0x30] sm:$0xf]
    %v306 = vld [vmem:[%s292 + $0x34] sm:$0xf]
    %v307 = vld [vmem:[%s292 + $0x38] sm:$0xf]
    %v308 = vld [vmem:[%s292 + $0x3c] sm:$0xf]
    %v309 = vld [vmem:[%s3 + $0x4] sm:$0x1]
    %v310 = vperm.slane %v309, 0
    %v327 = vunpack.c.l.b16 %v293
    %v328 = vunpack.c.l.b16 %v294
    %v329 = vunpack.c.l.b16 %v295
    %v330 = vunpack.c.l.b16 %v296
    %v331 = vunpack.c.l.b16 %v297
    %v332 = vunpack.c.l.b16 %v298
    %v333 = vunpack.c.l.b16 %v299
    %v334 = vunpack.c.l.b16 %v300
    %v335 = vunpack.c.l.b16 %v301
    %v336 = vunpack.c.l.b16 %v302
    %v337 = vunpack.c.l.b16 %v303
    %v338 = vunpack.c.l.b16 %v304
    %v339 = vunpack.c.l.b16 %v305
    %v340 = vunpack.c.l.b16 %v306
    %v341 = vunpack.c.l.b16 %v307
    %v342 = vunpack.c.l.b16 %v308
    %v343 = vpack.c.b16 %v328, %v327
    %v344 = vpack.c.b16 %v330, %v329
    %v345 = vpack.c.b16 %v332, %v331
    %v346 = vpack.c.b16 %v334, %v333
    %v347 = vpack.c.b16 %v336, %v335
    %v348 = vpack.c.b16 %v338, %v337
    %v349 = vpack.c.b16 %v340, %v339
    %v350 = vpack.c.b16 %v342, %v341
    %359 = vmatpush.bf16.msra.mxu0 %v350
    %360 = vmatpush.bf16.msra.mxu0 %v349
    %361 = vmatpush.bf16.msra.mxu0 %v348
    %362 = vmatpush.bf16.msra.mxu0 %v347
    %363 = vmatpush.bf16.msra.mxu0 %v346
    %364 = vmatpush.bf16.msra.mxu0 %v345
    %365 = vmatpush.bf16.msra.mxu0 %v344
    %366 = vmatpush.bf16.msra.mxu0 %v343
    %367 = vmatmul.bf16.gmra.mxu0 %v291
    %v368 = vpop.f32.mrf.mxu0
    %v369 = vadd.f32 %v310, %v368
    %v370 = vpop.f32.mrf.mxu0
    %v371 = vadd.f32 %v310, %v370
    %372 = vdwg.mxu0
    %v373 = vmax.f32 %v369, 0.0
    %v374 = vmax.f32 %v371, 0.0
    %v375 = vpack.c.bf16 %v374, %v373
    %s376 = scalar_lea.vmem [#allocation2], 256
    %v377 = vld [vmem:[%s376] sm:$0xf]
    %v378 = vld [vmem:[%s376 + $0x4] sm:$0xf]
    %v379 = vld [vmem:[%s376 + $0x8] sm:$0xf]
    %v380 = vld [vmem:[%s376 + $0xc] sm:$0xf]
    %v381 = vld [vmem:[%s376 + $0x10] sm:$0xf]
    %v382 = vld [vmem:[%s376 + $0x14] sm:$0xf]
    %v383 = vld [vmem:[%s376 + $0x18] sm:$0xf]
    %v384 = vld [vmem:[%s376 + $0x1c] sm:$0xf]
    %v385 = vld [vmem:[%s376 + $0x20] sm:$0xf]
    %v386 = vld [vmem:[%s376 + $0x24] sm:$0xf]
    %v387 = vld [vmem:[%s376 + $0x28] sm:$0xf]
    %v388 = vld [vmem:[%s376 + $0x2c] sm:$0xf]
    %v389 = vld [vmem:[%s376 + $0x30] sm:$0xf]
    %v390 = vld [vmem:[%s376 + $0x34] sm:$0xf]
    %v391 = vld [vmem:[%s376 + $0x38] sm:$0xf]
    %v392 = vld [vmem:[%s376 + $0x3c] sm:$0xf]
    %v393 = vld [vmem:[%s3 + $0x5] sm:$0x1]
    %v394 = vperm.slane %v393, 0
    %v411 = vunpack.c.l.b16 %v377
    %v412 = vunpack.c.l.b16 %v378
    %v413 = vunpack.c.l.b16 %v379
    %v414 = vunpack.c.l.b16 %v380
    %v415 = vunpack.c.l.b16 %v381
    %v416 = vunpack.c.l.b16 %v382
    %v417 = vunpack.c.l.b16 %v383
    %v418 = vunpack.c.l.b16 %v384
    %v419 = vunpack.c.l.b16 %v385
    %v420 = vunpack.c.l.b16 %v386
    %v421 = vunpack.c.l.b16 %v387
    %v422 = vunpack.c.l.b16 %v388
    %v423 = vunpack.c.l.b16 %v389
    %v424 = vunpack.c.l.b16 %v390
    %v425 = vunpack.c.l.b16 %v391
    %v426 = vunpack.c.l.b16 %v392
    %v427 = vpack.c.b16 %v412, %v411
    %v428 = vpack.c.b16 %v414, %v413
    %v429 = vpack.c.b16 %v416, %v415
    %v430 = vpack.c.b16 %v418, %v417
    %v431 = vpack.c.b16 %v420, %v419
    %v432 = vpack.c.b16 %v422, %v421
    %v433 = vpack.c.b16 %v424, %v423
    %v434 = vpack.c.b16 %v426, %v425
    %443 = vmatpush.bf16.msra.mxu0 %v434
    %444 = vmatpush.bf16.msra.mxu0 %v433
    %445 = vmatpush.bf16.msra.mxu0 %v432
    %446 = vmatpush.bf16.msra.mxu0 %v431
    %447 = vmatpush.bf16.msra.mxu0 %v430
    %448 = vmatpush.bf16.msra.mxu0 %v429
    %449 = vmatpush.bf16.msra.mxu0 %v428
    %450 = vmatpush.bf16.msra.mxu0 %v427
    %451 = vmatmul.bf16.gmra.mxu0 %v375
    %v452 = vpop.f32.mrf.mxu0
    %v453 = vadd.f32 %v394, %v452
    %v454 = vpop.f32.mrf.mxu0
    %v455 = vadd.f32 %v394, %v454
    %456 = vdwg.mxu0
    %v457 = vmax.f32 %v453, 0.0
    %v458 = vmax.f32 %v455, 0.0
    %v459 = vpack.c.bf16 %v458, %v457
    %v460 = vld [vmem:[%s2] sm:$0xf]
    %v461 = vld [vmem:[%s2 + $0x4] sm:$0xf]
    %v462 = vld [vmem:[%s2 + $0x8] sm:$0xf]
    %v463 = vld [vmem:[%s2 + $0xc] sm:$0xf]
    %v464 = vld [vmem:[%s2 + $0x10] sm:$0xf]
    %v465 = vld [vmem:[%s2 + $0x14] sm:$0xf]
    %v466 = vld [vmem:[%s2 + $0x18] sm:$0xf]
    %v467 = vld [vmem:[%s2 + $0x1c] sm:$0xf]
    %v468 = vld [vmem:[%s2 + $0x20] sm:$0xf]
    %v469 = vld [vmem:[%s2 + $0x24] sm:$0xf]
    %v470 = vld [vmem:[%s2 + $0x28] sm:$0xf]
    %v471 = vld [vmem:[%s2 + $0x2c] sm:$0xf]
    %v472 = vld [vmem:[%s2 + $0x30] sm:$0xf]
    %v473 = vld [vmem:[%s2 + $0x34] sm:$0xf]
    %v474 = vld [vmem:[%s2 + $0x38] sm:$0xf]
    %v475 = vld [vmem:[%s2 + $0x3c] sm:$0xf]
    %v476 = vld [vmem:[%s3 + $0x6] sm:$0x1]
    %v477 = vperm.slane %v476, 0
    %v494 = vunpack.c.l.b16 %v460
    %v495 = vunpack.c.l.b16 %v461
    %v496 = vunpack.c.l.b16 %v462
    %v497 = vunpack.c.l.b16 %v463
    %v498 = vunpack.c.l.b16 %v464
    %v499 = vunpack.c.l.b16 %v465
    %v500 = vunpack.c.l.b16 %v466
    %v501 = vunpack.c.l.b16 %v467
    %v502 = vunpack.c.l.b16 %v468
    %v503 = vunpack.c.l.b16 %v469
    %v504 = vunpack.c.l.b16 %v470
    %v505 = vunpack.c.l.b16 %v471
    %v506 = vunpack.c.l.b16 %v472
    %v507 = vunpack.c.l.b16 %v473
    %v508 = vunpack.c.l.b16 %v474
    %v509 = vunpack.c.l.b16 %v475
    %v510 = vpack.c.b16 %v495, %v494
    %v511 = vpack.c.b16 %v497, %v496
    %v512 = vpack.c.b16 %v499, %v498
    %v513 = vpack.c.b16 %v501, %v500
    %v514 = vpack.c.b16 %v503, %v502
    %v515 = vpack.c.b16 %v505, %v504
    %v516 = vpack.c.b16 %v507, %v506
    %v517 = vpack.c.b16 %v509, %v508
    %526 = vmatpush.bf16.msra.mxu0 %v517
    %527 = vmatpush.bf16.msra.mxu0 %v516
    %528 = vmatpush.bf16.msra.mxu0 %v515
    %529 = vmatpush.bf16.msra.mxu0 %v514
    %530 = vmatpush.bf16.msra.mxu0 %v513
    %531 = vmatpush.bf16.msra.mxu0 %v512
    %532 = vmatpush.bf16.msra.mxu0 %v511
    %533 = vmatpush.bf16.msra.mxu0 %v510
    %534 = vmatmul.bf16.gmra.mxu0 %v459
    %v535 = vpop.f32.mrf.mxu0
    %v536 = vadd.f32 %v477, %v535
    %v537 = vpop.f32.mrf.mxu0
    %v538 = vadd.f32 %v477, %v537
    %539 = vdwg.mxu0
    %vm540 = vcmask 64512
    %541 = vst.msk [vmem:[%s4] sm:$0xff] %vm540, %v536
    %542 = vst.msk [vmem:[%s4 + $0x8] sm:$0xff] %vm540, %v538
    // Predicated region
    $region22: #{qnet_forward.1} parent=1 // pred_check
      _
    $region23: #{qnet_forward.1} parent=1 // pred_check_branch
      %544 = sbr.rel (0) target = $region25
    $region24: #{qnet_forward.1} parent=1 // pred_region
      _
    $region25: #{qnet_forward.1} parent=1 // pred_fallthru
      _
    // Predicated region
    $region26: #{qnet_forward.1} parent=1 // pred_check
      _
    $region27: #{qnet_forward.1} parent=1 // pred_check_branch
      %546 = sbr.rel (0) target = $region29
    $region28: #{qnet_forward.1} parent=1 // pred_region
      _
    $region29: #{qnet_forward.1} parent=1 // pred_fallthru
      _
    %547 = vsyncpa [#allocation3], 1

</llo_original>
